<compile_context>
chip_gen: v7x
topology: tpu7x:2x2x1
jax: 0.10.0
libtpu: 0.0.40
codegen_flags: <defaults>
</compile_context>

<pallas_src>
import functools

import jax
import jax.numpy as jnp
from jax.experimental import pallas as pl
from jax.experimental.pallas import tpu as pltpu


def _head_kernel(x_ref, wqkv_ref, bias_ref, o_ref, *, head_size):
    """One grid step processes a (Bb, T, C) batch-block.

    x_ref    : (Bb, T, C)  f32   (cast to bf16 in-kernel)
    wqkv_ref : (C, 3H)     bf16  (query columns pre-scaled by 1/sqrt(H))
    bias_ref : (T, T)      bf16  (RPE bias with causal mask pre-folded: -1e30)
    o_ref    : (Bb, T, H)  f32
    """
    H = head_size
    Bb, T, C = x_ref.shape

    # Cast after the DMA (x stays f32 in HBM; no wrapper-side cast pass).
    x = x_ref[...].astype(jnp.bfloat16)              # (Bb, T, C)
    w = wqkv_ref[...]                                # (C, 3H) bf16

    # Fused Q/K/V projection with the batch collapsed into M: one un-batched
    # MXU matmul (M = Bb*T) instead of Bb tiny batched matmuls.
    x2 = x.reshape(Bb * T, C)
    qkv = jax.lax.dot_general(
        x2, w, dimension_numbers=(((1,), (0,)), ((), ())),
        preferred_element_type=jnp.float32)          # (Bb*T, 3H) f32
    qkv = qkv.reshape(Bb, T, 3 * H)

    # TODO(synk): with multi-head fusion these lane spans should each be a
    # multiple of 128 so the split is vreg-aligned; with a single H=16 head
    # the slices are tiny anyway.
    q = qkv[..., :H]
    k = qkv[..., H:2 * H]
    v = qkv[..., 2 * H:]

    # Scores: contract the last dims of q and k directly (no explicit k.T).
    s = jax.lax.dot_general(
        q.astype(jnp.bfloat16), k.astype(jnp.bfloat16),
        dimension_numbers=(((2,), (2,)), ((0,), (0,))),
        preferred_element_type=jnp.float32)          # (Bb, T, T) f32

    # Bias streamed as bf16, upcast for the f32 softmax path. Mask and the
    # 1/sqrt(H) scale are already folded in (mask -> -1e30, scale -> Wq).
    s = s + bias_ref[...].astype(jnp.float32)[None, :, :]

    # Softmax kept in f32; normalization deferred to the (T, H) output.
    m = jnp.max(s, axis=-1, keepdims=True)
    e = jnp.exp(s - m)
    denom = jnp.sum(e, axis=-1, keepdims=True)       # (Bb, T, 1)

    # TODO(synk): attention-weight dropout (training mode) not applied here.
    o = jax.lax.dot_general(
        e.astype(jnp.bfloat16), v.astype(jnp.bfloat16),
        dimension_numbers=(((2,), (1,)), ((0,), (0,))),
        preferred_element_type=jnp.float32)          # (Bb, T, H) f32

    inv = pl.reciprocal(denom, approx=True)          # EUP slot, frees VALU
    o_ref[...] = (o * inv).astype(o_ref.dtype)


def prepare_head_params(wq_t, wk_t, wv_t, head_bias):
    """One-time parameter preprocessing (run once, reuse for every forward).

    wq_t/wk_t/wv_t : (C, H) f32 transposed nn.Linear weights.
    head_bias      : (T, T) f32 relative-position bias for this head.

    Returns (wqkv_bf16 (C,3H), bias_masked_bf16 (T,T)).
    """
    H = wq_t.shape[1]
    T = head_bias.shape[0]

    # Fold the 1/sqrt(H) score scale into Wq (in f32, before the bf16 cast),
    # then fuse the three projection weights into one (C, 3H) operand.
    scale = jnp.float32(H) ** -0.5
    wqkv = jnp.concatenate(
        [wq_t.astype(jnp.float32) * scale,
         wk_t.astype(jnp.float32),
         wv_t.astype(jnp.float32)], axis=1).astype(jnp.bfloat16)

    # Pre-fold the causal (tril) mask into the bias. A large finite negative
    # (-1e30, representable in bf16) is used instead of -inf; exp underflows
    # to exactly 0 and the diagonal is never masked, so no NaN risk.
    row = jax.lax.broadcasted_iota(jnp.int32, (T, T), 0)
    col = jax.lax.broadcasted_iota(jnp.int32, (T, T), 1)
    bias_masked = jnp.where(col <= row, head_bias.astype(jnp.float32),
                            jnp.float32(-1e30)).astype(jnp.bfloat16)
    return wqkv, bias_masked


def head_forward(x, wqkv_bf16, bias_masked_bf16, *, head_size,
                 batch_block=None, out_dtype=jnp.float32):
    """x: (B, T, C) f32. Returns (B, T, head_size) eval-mode attention output.

    batch_block: rows of the batch processed per grid step. None -> whole
    batch in one step (right for tiny B); for real batches on v7x use
    batch_block = B // 2 so the "parallel" grid axis shards across both
    TensorCores.
    """
    B, T, C = x.shape
    H = head_size
    bb = B if batch_block is None else batch_block
    assert B % bb == 0, "batch_block must divide batch"
    assert wqkv_bf16.shape == (C, 3 * H)
    assert bias_masked_bf16.shape == (T, T)

    kernel = functools.partial(_head_kernel, head_size=H)
    return pl.pallas_call(
        kernel,
        out_shape=jax.ShapeDtypeStruct((B, T, H), out_dtype),
        grid_spec=pltpu.PrefetchScalarGridSpec(
            num_scalar_prefetch=0,
            grid=(B // bb,),
            in_specs=[
                pl.BlockSpec((bb, T, C), lambda b: (b, 0, 0)),
                pl.BlockSpec((C, 3 * H), lambda b: (0, 0)),
                pl.BlockSpec((T, T), lambda b: (0, 0)),
            ],
            out_specs=pl.BlockSpec((bb, T, H), lambda b: (b, 0, 0)),
        ),
        # Toy shapes fit easily in the default scoped VMEM; for production T
        # set vmem_limit_bytes explicitly and re-derive bb for v7x (64 MiB).
        compiler_params=pltpu.CompilerParams(
            dimension_semantics=("parallel",)),
    )(x, wqkv_bf16, bias_masked_bf16)


def head_reference(x, wq_t, wk_t, wv_t, head_bias):
    """Pure-JAX f32 reference mirroring the PyTorch forward (eval mode)."""
    q = x @ wq_t
    k = x @ wk_t
    v = x @ wv_t
    T = x.shape[1]
    w = (q @ jnp.swapaxes(k, -2, -1)) * (k.shape[-1] ** -0.5)
    w = w + head_bias[None, :, :]
    tril = jnp.tril(jnp.ones((T, T), jnp.float32))
    w = jnp.where(tril == 0, -jnp.inf, w)
    w = jax.nn.softmax(w, axis=-1)
    return w @ v


if __name__ == "__main__":
    # Small shapes consistent with the module: B=2, T=block_size=8,
    # C=n_embd=32, head_size=16.
    B, T, C, H = 2, 8, 32, 16

    key = jax.random.PRNGKey(0)
    kx, kb, kq, kk, kv = jax.random.split(key, 5)

    x = jax.random.normal(kx, (B, T, C), dtype=jnp.float32)
    head_bias = 0.1 * jax.random.normal(kb, (T, T), dtype=jnp.float32)

    # nn.Linear(n_embd, head_size, bias=False) weights have shape (H, C);
    # we store the transpose (C, H) so the kernel does x @ W^T via x @ wt.
    bound = 1.0 / jnp.sqrt(jnp.float32(C))
    wq_t = jax.random.uniform(kq, (C, H), jnp.float32, -bound, bound)
    wk_t = jax.random.uniform(kk, (C, H), jnp.float32, -bound, bound)
    wv_t = jax.random.uniform(kv, (C, H), jnp.float32, -bound, bound)

    # One-time parameter preprocessing (amortized across all forward calls).
    wqkv_bf16, bias_masked = prepare_head_params(wq_t, wk_t, wv_t, head_bias)
    wqkv_bf16 = jax.block_until_ready(wqkv_bf16)
    bias_masked = jax.block_until_ready(bias_masked)

    out = head_forward(x, wqkv_bf16, bias_masked, head_size=H)
    out = jax.block_until_ready(out)

    ref = head_reference(x, wq_t, wk_t, wv_t, head_bias)
    assert out.shape == (B, T, H)
    # bf16 MXU operands + bf16 bias + approx reciprocal -> loosened tolerance.
    assert jnp.allclose(out, ref, atol=5e-2, rtol=5e-2), "mismatch vs reference"

    print("KERNEL_OK")
</pallas_src>

<mosaic_0001>
module attributes {stable_mosaic.version = 11 : i64} {
  func.func @_head_kernel(%arg0: i32, %arg1: memref<2x8x32xf32, #tpu.memory_space<vmem>>, %arg2: memref<32x48xbf16, #tpu.memory_space<vmem>>, %arg3: memref<8x8xbf16, #tpu.memory_space<vmem>>, %arg4: memref<2x8x16xf32, #tpu.memory_space<vmem>>) attributes {dimension_semantics = [#tpu.dimension_semantics<parallel>], iteration_bounds = array<i64: 1>, scalar_prefetch = 0 : i64, scratch_operands = 0 : i64, tpu.core_type = #tpu.core_type<tc>, window_params = [{transform_indices = @transform_0, window_bounds = array<i64: 2, 8, 32>}, {pipeline_mode = #tpu.pipeline_mode<synchronous>, transform_indices = @transform_1, window_bounds = array<i64: 32, 48>}, {pipeline_mode = #tpu.pipeline_mode<synchronous>, transform_indices = @transform_2, window_bounds = array<i64: 8, 8>}, {transform_indices = @transform_3, window_bounds = array<i64: 2, 8, 16>}]} {
    %c0 = arith.constant 0 : index
    %c0_0 = arith.constant 0 : index
    %c0_1 = arith.constant 0 : index
    %0 = vector.load %arg1[%c0, %c0_0, %c0_1] : memref<2x8x32xf32, #tpu.memory_space<vmem>>, vector<2x8x32xf32>
    %1 = arith.truncf %0 : vector<2x8x32xf32> to vector<2x8x32xbf16>
    %c0_2 = arith.constant 0 : index
    %c0_3 = arith.constant 0 : index
    %2 = vector.load %arg2[%c0_2, %c0_3] : memref<32x48xbf16, #tpu.memory_space<vmem>>, vector<32x48xbf16>
    %3 = vector.shape_cast %1 : vector<2x8x32xbf16> to vector<16x32xbf16>
    %cst = arith.constant dense<0.000000e+00> : vector<16x48xf32>
    %4 = tpu.matmul %3, %2, %cst {dimension_numbers = #tpu.dot_dimension_numbers<[1], [0], [0], [1], [0, 0, 1, 1], [], []>} : vector<16x32xbf16>, vector<32x48xbf16>, vector<16x48xf32> -> vector<16x48xf32>
    %5 = vector.shape_cast %4 : vector<16x48xf32> to vector<2x8x48xf32>
    %6 = vector.extract_strided_slice %5 {offsets = [0, 0, 0], sizes = [2, 8, 16], strides = [1, 1, 1]} : vector<2x8x48xf32> to vector<2x8x16xf32>
    %7 = vector.extract_strided_slice %5 {offsets = [0, 0, 16], sizes = [2, 8, 16], strides = [1, 1, 1]} : vector<2x8x48xf32> to vector<2x8x16xf32>
    %8 = vector.extract_strided_slice %5 {offsets = [0, 0, 32], sizes = [2, 8, 16], strides = [1, 1, 1]} : vector<2x8x48xf32> to vector<2x8x16xf32>
    %9 = arith.truncf %6 : vector<2x8x16xf32> to vector<2x8x16xbf16>
    %10 = arith.truncf %7 : vector<2x8x16xf32> to vector<2x8x16xbf16>
    %cst_4 = arith.constant dense<0.000000e+00> : vector<2x8x8xf32>
    %11 = tpu.matmul %9, %10, %cst_4 {dimension_numbers = #tpu.dot_dimension_numbers<[2], [2], [1], [1], [0, 0, 0, 1, 1, 1], [0], [0]>} : vector<2x8x16xbf16>, vector<2x8x16xbf16>, vector<2x8x8xf32> -> vector<2x8x8xf32>
    %c0_5 = arith.constant 0 : index
    %c0_6 = arith.constant 0 : index
    %12 = vector.load %arg3[%c0_5, %c0_6] : memref<8x8xbf16, #tpu.memory_space<vmem>>, vector<8x8xbf16>
    %13 = arith.extf %12 : vector<8x8xbf16> to vector<8x8xf32>
    %14 = vector.shape_cast %13 : vector<8x8xf32> to vector<1x8x8xf32>
    %15 = vector.broadcast %14 : vector<1x8x8xf32> to vector<2x8x8xf32>
    %16 = arith.addf %11, %15 : vector<2x8x8xf32>
    %cst_7 = arith.constant dense<0xFF800000> : vector<2x8xf32>
    %17 = vector.multi_reduction <maximumf>, %16, %cst_7 [2] : vector<2x8x8xf32> to vector<2x8xf32>
    %18 = vector.shape_cast %17 : vector<2x8xf32> to vector<2x8x1xf32>
    %19 = vector.broadcast %18 : vector<2x8x1xf32> to vector<2x8x8xf32>
    %20 = arith.subf %16, %19 : vector<2x8x8xf32>
    %21 = math.exp %20 : vector<2x8x8xf32>
    %cst_8 = arith.constant dense<0.000000e+00> : vector<2x8xf32>
    %22 = vector.multi_reduction <add>, %21, %cst_8 [2] : vector<2x8x8xf32> to vector<2x8xf32>
    %23 = vector.shape_cast %22 : vector<2x8xf32> to vector<2x8x1xf32>
    %24 = arith.truncf %21 : vector<2x8x8xf32> to vector<2x8x8xbf16>
    %25 = arith.truncf %8 : vector<2x8x16xf32> to vector<2x8x16xbf16>
    %cst_9 = arith.constant dense<0.000000e+00> : vector<2x8x16xf32>
    %26 = tpu.matmul %24, %25, %cst_9 {dimension_numbers = #tpu.dot_dimension_numbers<[2], [1], [1], [2], [0, 0, 0, 1, 1, 2], [0], [0]>} : vector<2x8x8xbf16>, vector<2x8x16xbf16>, vector<2x8x16xf32> -> vector<2x8x16xf32>
    %27 = tpu.reciprocal %23 {approx = true} : vector<2x8x1xf32> -> vector<2x8x1xf32>
    %28 = vector.broadcast %27 : vector<2x8x1xf32> to vector<2x8x16xf32>
    %29 = arith.mulf %26, %28 : vector<2x8x16xf32>
    %c0_10 = arith.constant 0 : index
    %c0_11 = arith.constant 0 : index
    %c0_12 = arith.constant 0 : index
    %30 = vector.load %arg4[%c0_10, %c0_11, %c0_12] : memref<2x8x16xf32, #tpu.memory_space<vmem>>, vector<2x8x16xf32>
    tpu.vector_store %arg4[%c0_10, %c0_11, %c0_12], %29 {strides = array<i32>} : memref<2x8x16xf32, #tpu.memory_space<vmem>>, vector<2x8x16xf32>,
    return
  }
  func.func @transform_0(%arg0: i32) -> (i32, i32, i32) {
    %c0_i32 = arith.constant 0 : i32
    %c0_i32_0 = arith.constant 0 : i32
    %c0_i32_1 = arith.constant 0 : i32
    return %arg0, %c0_i32, %c0_i32_0 : i32, i32, i32
  }
  func.func @transform_1(%arg0: i32) -> (i32, i32) {
    %c0_i32 = arith.constant 0 : i32
    %c0_i32_0 = arith.constant 0 : i32
    %c0_i32_1 = arith.constant 0 : i32
    return %c0_i32, %c0_i32_0 : i32, i32
  }
  func.func @transform_2(%arg0: i32) -> (i32, i32) {
    %c0_i32 = arith.constant 0 : i32
    %c0_i32_0 = arith.constant 0 : i32
    %c0_i32_1 = arith.constant 0 : i32
    return %c0_i32, %c0_i32_0 : i32, i32
  }
  func.func @transform_3(%arg0: i32) -> (i32, i32, i32) {
    %c0_i32 = arith.constant 0 : i32
    %c0_i32_0 = arith.constant 0 : i32
    %c0_i32_1 = arith.constant 0 : i32
    return %arg0, %c0_i32, %c0_i32_0 : i32, i32, i32
  }
}

</mosaic_0001>

<llo_original>
// kernel: tpu_custom_call.1
$region0: #{tpu_custom_call.1}
  #allocation0 [shape = 'u32[]', space=smem, size = 0x4, offset = 0x4, fixed_abs, tag = 'smem constant byte address 0x4 - core index']
  #allocation1 [shape = 'u32[144,128]{1,0:T(1,128)}', space=vmem, size = 0x12000, scoped, tag = 'internal scratch']
  %s0 = inlined_call_operand.hbm [shape: f32[2,8,32], index: 0, kind: input, shape index: {}]
  %s1 = inlined_call_operand.hbm [shape: bf16[32,48], index: 1, kind: input, shape index: {}]
  %s2 = inlined_call_operand.vmem [shape: bf16[8,8], index: 2, kind: input, shape index: {}]
  %s3 = inlined_call_operand.hbm [shape: f32[2,8,16], index: 3, kind: output, shape index: {}]
  %s4 = sld [smem:[#allocation0]]
  $region30: #{tpu_custom_call.1} parent=0
    _
  %s6 = ssub.s32 1, %s4
  %s7 = scalar_select 0, %s6, %s4
  $region1: #{tpu_custom_call.1} parent=0
    #allocation2 [shape = 'u8[8192]{0}', space=vmem, size = 0x2000, scoped, tag = 'input window, operand 0, single buffered']
    #allocation3 [shape = 's32[1]{0}', space=sflag, size = 0x4, scoped, tag = 'scoped memory for tpu_custom_call.1']
    #allocation4 [shape = 's32[1]{0}', space=sflag, size = 0x4, scoped, tag = 'scoped memory for tpu_custom_call.1']
    #allocation5 [shape = 'u8[8192]{0}', space=vmem, size = 0x2000, scoped, tag = 'input window, operand 1, single buffered']
    #allocation6 [shape = 's32[1]{0}', space=sflag, size = 0x4, scoped, tag = 'scoped memory for tpu_custom_call.1']
    #allocation7 [shape = 'u8[8192]{0}', space=vmem, size = 0x2000, scoped, tag = 'output window, operand 0, single buffered']
    %8 = vsyncpa [#allocation3], 0
    %9 = vsyncpa [#allocation6], 0
    %10 = vsyncpa [#allocation4], 0
    // Predicated region
    $region2: #{tpu_custom_call.1} parent=1 // pred_check
      _
    $region3: #{tpu_custom_call.1} parent=1 // pred_check_branch
      %12 = sbr.rel (0) target = $region5
    $region4: #{tpu_custom_call.1} parent=1 // pred_region
      %s14 = ssub.s32 256, 256
      %15 = vsyncadd [#allocation3], %s14
      %s16 = sshll.u32 [#allocation2], 4
      %s17 = int_to_ptr.vmem [resolvable:$true] %s16
      %22 = dma.hbm_to_vmem [thread:$0]  %s0, 256, %s17, [#allocation3], 128, 128, 8
    $region5: #{tpu_custom_call.1} parent=1 // pred_fallthru
      _
    // Predicated region
    $region6: #{tpu_custom_call.1} parent=1 // pred_check
      _
    $region7: #{tpu_custom_call.1} parent=1 // pred_check_branch
      %24 = sbr.rel (0) target = $region9
    $region8: #{tpu_custom_call.1} parent=1 // pred_region
      %s26 = ssub.s32 256, 256
      %27 = vsyncadd [#allocation6], %s26
      %s28 = sshll.u32 [#allocation5], 4
      %s29 = int_to_ptr.vmem [resolvable:$true] %s28
      %34 = dma.hbm_to_vmem [thread:$0]  %s1, 256, %s29, [#allocation6], 64, 64, 4
    $region9: #{tpu_custom_call.1} parent=1 // pred_fallthru
      _
    // Predicated region
    $region10: #{tpu_custom_call.1} parent=1 // pred_check
      _
    $region11: #{tpu_custom_call.1} parent=1 // pred_check_branch
      %36 = sbr.rel (0) target = $region13
    $region12: #{tpu_custom_call.1} parent=1 // pred_region
      _
    $region13: #{tpu_custom_call.1} parent=1 // pred_fallthru
      _
    // Predicated region
    $region14: #{tpu_custom_call.1} parent=1 // pred_check
      _
    $region15: #{tpu_custom_call.1} parent=1 // pred_check_branch
      %38 = sbr.rel (0) target = $region17
    $region16: #{tpu_custom_call.1} parent=1 // pred_region
      %39 = dma.done [#allocation3], 256
    $region17: #{tpu_custom_call.1} parent=1 // pred_fallthru
      _
    // Predicated region
    $region18: #{tpu_custom_call.1} parent=1 // pred_check
      _
    $region19: #{tpu_custom_call.1} parent=1 // pred_check_branch
      %41 = sbr.rel (0) target = $region21
    $region20: #{tpu_custom_call.1} parent=1 // pred_region
      %42 = dma.done [#allocation6], 256
    $region21: #{tpu_custom_call.1} parent=1 // pred_fallthru
      _
    %v44 = vld [vmem:[#allocation2] sm:$0xff]
    %v45 = vld [vmem:[#allocation2 + $0x8] sm:$0xff]
    %v46 = vpack.c.bf16 %v44, %v44
    %v47 = vpack.c.bf16 %v45, %v45
    %v48 = vld [vmem:[#allocation5] sm:$0xf]
    %v49 = vld [vmem:[#allocation5 + $0x4] sm:$0xf]
    %v50 = vld [vmem:[#allocation5 + $0x8] sm:$0xf]
    %v51 = vld [vmem:[#allocation5 + $0xc] sm:$0xf]
    %v54 = vunpack.c.l.b16 %v46
    %v55 = vunpack.c.l.b16 %v47
    %v56 = vpack.c.b16 %v55, %v54
    %v61 = vunpack.c.l.b16 %v48
    %v62 = vunpack.c.l.b16 %v49
    %v63 = vunpack.c.l.b16 %v50
    %v64 = vunpack.c.l.b16 %v51
    %v65 = vpack.c.b16 %v62, %v61
    %v66 = vpack.c.b16 %v64, %v63
    %vm69 = vcmask 261120
    %v71 = vsel %vm69, %v56, 0
    %73 = vmatprep.subr.bf16.mxu0 0
    %74 = vmatpush1.bf16.msra.mxu0 %v65
    %75 = vmatprep.subr.bf16.mxu0 0
    %76 = vmatpush1.bf16.msra.mxu0 %v66
    %77 = vmatprep.subr.bf16.mxu0 0
    %78 = vmatpush1.bf16.msra.mxu0 0
    %79 = vmatprep.subr.bf16.mxu0 0
    %80 = vmatpush1.bf16.msra.mxu0 0
    %81 = vmatprep.subr.bf16.mxu0 0
    %82 = vmatpush1.bf16.msra.mxu0 0
    %83 = vmatprep.subr.bf16.mxu0 0
    %84 = vmatpush1.bf16.msra.mxu0 0
    %85 = vmatprep.subr.bf16.mxu0 0
    %86 = vmatpush1.bf16.msra.mxu0 0
    %87 = vmatprep.subr.bf16.mxu0 0
    %88 = vmatpush1.bf16.msra.mxu0 0
    %89 = vmatprep.subr.bf16.mxu0 0
    %90 = vmatpush1.bf16.msra.mxu0 0
    %91 = vmatprep.subr.bf16.mxu0 0
    %92 = vmatpush1.bf16.msra.mxu0 0
    %93 = vmatprep.subr.bf16.mxu0 0
    %94 = vmatpush1.bf16.msra.mxu0 0
    %95 = vmatprep.subr.bf16.mxu0 0
    %96 = vmatpush1.bf16.msra.mxu0 0
    %97 = vmatprep.subr.bf16.mxu0 0
    %98 = vmatpush1.bf16.msra.mxu0 0
    %99 = vmatprep.subr.bf16.mxu0 0
    %100 = vmatpush1.bf16.msra.mxu0 0
    %101 = vmatprep.subr.bf16.mxu0 0
    %102 = vmatpush1.bf16.msra.mxu0 0
    %103 = vmatprep.subr.bf16.mxu0 0
    %104 = vmatpush1.bf16.msra.mxu0 0
    %105 = vmatprep.mubr.bf16.mxu0 0
    %106 = vmatmul.mubr.bf16.gmra.mrb[0].mxu0 %v71
    %v107 = vpop.f32.mrb[0].mxu0
    %v108 = vadd.f32 0.0, %v107
    %v109 = vpop.f32.mrb[0].mxu0
    %v110 = vpop.f32.mrb[0].mxu0
    %v111 = vadd.f32 0.0, %v110
    %v112 = vpop.f32.mrb[0].mxu0
    %113 = vdwg.mxu0
    %v114 = vpack.c.bf16 %v108, %v108
    %v115 = vpack.c.bf16 %v111, %v111
    %v116 = vld [vmem:[%s2] sm:$0xf]
    %v117 = vunpack.c.l.bf16 %v116
    %119 = vrot.lane.b32.xlu0 %v114, 112
    %v120 = vpop.permute.xlu0 %119
    %vm121 = vcmask 130048
    %v123 = vsel %vm121, %v114, 0
    %v126 = vsel %vm121, %v120, 0
    %128 = vmatprep.subr.bf16.mxu0 0
    %129 = vmatpush1.bf16.xpose.msra.mxu0 %v126
    %130 = vmatprep.subr.bf16.mxu0 0
    %131 = vmatpush1.bf16.xpose.msra.mxu0 0
    %132 = vmatprep.subr.bf16.mxu0 0
    %133 = vmatpush1.bf16.xpose.msra.mxu0 0
    %134 = vmatprep.subr.bf16.mxu0 0
    %135 = vmatpush1.bf16.xpose.msra.mxu0 0
    %136 = vmatprep.subr.bf16.mxu0 0
    %137 = vmatpush1.bf16.xpose.msra.mxu0 0
    %138 = vmatprep.subr.bf16.mxu0 0
    %139 = vmatpush1.bf16.xpose.msra.mxu0 0
    %140 = vmatprep.subr.bf16.mxu0 0
    %141 = vmatpush1.bf16.xpose.msra.mxu0 0
    %142 = vmatprep.subr.bf16.mxu0 0
    %143 = vmatpush1.bf16.xpose.msra.mxu0 0
    %144 = vmatprep.subr.bf16.mxu0 0
    %145 = vmatpush1.bf16.xpose.msra.mxu0 0
    %146 = vmatprep.subr.bf16.mxu0 0
    %147 = vmatpush1.bf16.xpose.msra.mxu0 0
    %148 = vmatprep.subr.bf16.mxu0 0
    %149 = vmatpush1.bf16.xpose.msra.mxu0 0
    %150 = vmatprep.subr.bf16.mxu0 0
    %151 = vmatpush1.bf16.xpose.msra.mxu0 0
    %152 = vmatprep.subr.bf16.mxu0 0
    %153 = vmatpush1.bf16.xpose.msra.mxu0 0
    %154 = vmatprep.subr.bf16.mxu0 0
    %155 = vmatpush1.bf16.xpose.msra.mxu0 0
    %156 = vmatprep.subr.bf16.mxu0 0
    %157 = vmatpush1.bf16.xpose.msra.mxu0 0
    %158 = vmatprep.subr.bf16.mxu0 0
    %159 = vmatpush1.bf16.xpose.msra.mxu0 0
    %160 = vmatprep.mubr.bf16.mxu0 0
    %161 = vmatmul.mubr.bf16.gmra.mrb[0].mxu0 %v123
    %v162 = vpop.f32.mrb[0].mxu0
    %v163 = vadd.f32 %v117, %v162
    %v164 = vpop.f32.mrb[0].mxu0
    %v165 = vpop.f32.mrb[0].mxu0
    %v166 = vpop.f32.mrb[0].mxu0
    %167 = vdwg.mxu0
    %169 = vrot.lane.b32.xlu0 %v115, 112
    %v170 = vpop.permute.xlu0 %169
    %v172 = vsel %vm121, %v115, 0
    %v175 = vsel %vm121, %v170, 0
    %177 = vmatprep.subr.bf16.mxu0 0
    %178 = vmatpush1.bf16.xpose.msra.mxu0 %v175
    %179 = vmatprep.subr.bf16.mxu0 0
    %180 = vmatpush1.bf16.xpose.msra.mxu0 0
    %181 = vmatprep.subr.bf16.mxu0 0
    %182 = vmatpush1.bf16.xpose.msra.mxu0 0
    %183 = vmatprep.subr.bf16.mxu0 0
    %184 = vmatpush1.bf16.xpose.msra.mxu0 0
    %185 = vmatprep.subr.bf16.mxu0 0
    %186 = vmatpush1.bf16.xpose.msra.mxu0 0
    %187 = vmatprep.subr.bf16.mxu0 0
    %188 = vmatpush1.bf16.xpose.msra.mxu0 0
    %189 = vmatprep.subr.bf16.mxu0 0
    %190 = vmatpush1.bf16.xpose.msra.mxu0 0
    %191 = vmatprep.subr.bf16.mxu0 0
    %192 = vmatpush1.bf16.xpose.msra.mxu0 0
    %193 = vmatprep.subr.bf16.mxu0 0
    %194 = vmatpush1.bf16.xpose.msra.mxu0 0
    %195 = vmatprep.subr.bf16.mxu0 0
    %196 = vmatpush1.bf16.xpose.msra.mxu0 0
    %197 = vmatprep.subr.bf16.mxu0 0
    %198 = vmatpush1.bf16.xpose.msra.mxu0 0
    %199 = vmatprep.subr.bf16.mxu0 0
    %200 = vmatpush1.bf16.xpose.msra.mxu0 0
    %201 = vmatprep.subr.bf16.mxu0 0
    %202 = vmatpush1.bf16.xpose.msra.mxu0 0
    %203 = vmatprep.subr.bf16.mxu0 0
    %204 = vmatpush1.bf16.xpose.msra.mxu0 0
    %205 = vmatprep.subr.bf16.mxu0 0
    %206 = vmatpush1.bf16.xpose.msra.mxu0 0
    %207 = vmatprep.subr.bf16.mxu0 0
    %208 = vmatpush1.bf16.xpose.msra.mxu0 0
    %209 = vmatprep.mubr.bf16.mxu0 0
    %210 = vmatmul.mubr.bf16.gmra.mrb[0].mxu0 %v172
    %v211 = vpop.f32.mrb[0].mxu0
    %v212 = vadd.f32 %v117, %v211
    %v213 = vpop.f32.mrb[0].mxu0
    %v214 = vpop.f32.mrb[0].mxu0
    %v215 = vpop.f32.mrb[0].mxu0
    %216 = vdwg.mxu0
    %vm217 = vcmask 64512
    %v218 = vsel %vm217, %v163, -inf
    %219 = vmax.xlane.f32.xlu0 %v218
    %v220 = vpop.xlane.xlu0 %219
    %v221 = vsel %vm217, %v212, -inf
    %222 = vmax.xlane.f32.xlu0 %v221
    %v223 = vpop.xlane.xlu0 %222
    %v224 = vsub.f32 %v163, %v220
    %v225 = vsub.f32 %v212, %v223
    %v226 = vmul.f32 %v224, 1.442695
    %v227 = vpow.pop %v226
    %v228 = vmul.f32 %v225, 1.442695
    %v229 = vpow.pop %v228
    %v230 = vsel %vm217, %v227, 0.0
    %231 = vadd.xlane.f32.xlu0 %v230
    %v232 = vpop.xlane.xlu0 %231
    %v233 = vsel %vm217, %v229, 0.0
    %234 = vadd.xlane.f32.xlu0 %v233
    %v235 = vpop.xlane.xlu0 %234
    %v236 = vpack.c.bf16 %v227, %v227
    %v237 = vpack.c.bf16 %v229, %v229
    %238 = vrot.lane.b32.xlu0 %v114, 96
    %v239 = vpop.permute.xlu0 %238
    %v241 = vsel %vm217, %v236, 0
    %vm243 = vcmask 1043456
    %v245 = vsel %vm243, %v239, 0
    %247 = vmatprep.subr.bf16.mxu0 0
    %248 = vmatpush1.bf16.msra.mxu0 %v245
    %249 = vmatprep.subr.bf16.mxu0 0
    %250 = vmatpush1.bf16.msra.mxu0 0
    %251 = vmatprep.subr.bf16.mxu0 0
    %252 = vmatpush1.bf16.msra.mxu0 0
    %253 = vmatprep.subr.bf16.mxu0 0
    %254 = vmatpush1.bf16.msra.mxu0 0
    %255 = vmatprep.subr.bf16.mxu0 0
    %256 = vmatpush1.bf16.msra.mxu0 0
    %257 = vmatprep.subr.bf16.mxu0 0
    %258 = vmatpush1.bf16.msra.mxu0 0
    %259 = vmatprep.subr.bf16.mxu0 0
    %260 = vmatpush1.bf16.msra.mxu0 0
    %261 = vmatprep.subr.bf16.mxu0 0
    %262 = vmatpush1.bf16.msra.mxu0 0
    %263 = vmatprep.subr.bf16.mxu0 0
    %264 = vmatpush1.bf16.msra.mxu0 0
    %265 = vmatprep.subr.bf16.mxu0 0
    %266 = vmatpush1.bf16.msra.mxu0 0
    %267 = vmatprep.subr.bf16.mxu0 0
    %268 = vmatpush1.bf16.msra.mxu0 0
    %269 = vmatprep.subr.bf16.mxu0 0
    %270 = vmatpush1.bf16.msra.mxu0 0
    %271 = vmatprep.subr.bf16.mxu0 0
    %272 = vmatpush1.bf16.msra.mxu0 0
    %273 = vmatprep.subr.bf16.mxu0 0
    %274 = vmatpush1.bf16.msra.mxu0 0
    %275 = vmatprep.subr.bf16.mxu0 0
    %276 = vmatpush1.bf16.msra.mxu0 0
    %277 = vmatprep.subr.bf16.mxu0 0
    %278 = vmatpush1.bf16.msra.mxu0 0
    %279 = vmatprep.mubr.bf16.mxu0 0
    %280 = vmatmul.mubr.bf16.gmra.mrb[0].mxu0 %v241
    %v281 = vpop.f32.mrb[0].mxu0
    %v282 = vadd.f32 0.0, %v281
    %v283 = vpop.f32.mrb[0].mxu0
    %v284 = vpop.f32.mrb[0].mxu0
    %v285 = vpop.f32.mrb[0].mxu0
    %286 = vdwg.mxu0
    %287 = vrot.lane.b32.xlu0 %v115, 96
    %v288 = vpop.permute.xlu0 %287
    %v290 = vsel %vm217, %v237, 0
    %v293 = vsel %vm243, %v288, 0
    %295 = vmatprep.subr.bf16.mxu0 0
    %296 = vmatpush1.bf16.msra.mxu0 %v293
    %297 = vmatprep.subr.bf16.mxu0 0
    %298 = vmatpush1.bf16.msra.mxu0 0
    %299 = vmatprep.subr.bf16.mxu0 0
    %300 = vmatpush1.bf16.msra.mxu0 0
    %301 = vmatprep.subr.bf16.mxu0 0
    %302 = vmatpush1.bf16.msra.mxu0 0
    %303 = vmatprep.subr.bf16.mxu0 0
    %304 = vmatpush1.bf16.msra.mxu0 0
    %305 = vmatprep.subr.bf16.mxu0 0
    %306 = vmatpush1.bf16.msra.mxu0 0
    %307 = vmatprep.subr.bf16.mxu0 0
    %308 = vmatpush1.bf16.msra.mxu0 0
    %309 = vmatprep.subr.bf16.mxu0 0
    %310 = vmatpush1.bf16.msra.mxu0 0
    %311 = vmatprep.subr.bf16.mxu0 0
    %312 = vmatpush1.bf16.msra.mxu0 0
    %313 = vmatprep.subr.bf16.mxu0 0
    %314 = vmatpush1.bf16.msra.mxu0 0
    %315 = vmatprep.subr.bf16.mxu0 0
    %316 = vmatpush1.bf16.msra.mxu0 0
    %317 = vmatprep.subr.bf16.mxu0 0
    %318 = vmatpush1.bf16.msra.mxu0 0
    %319 = vmatprep.subr.bf16.mxu0 0
    %320 = vmatpush1.bf16.msra.mxu0 0
    %321 = vmatprep.subr.bf16.mxu0 0
    %322 = vmatpush1.bf16.msra.mxu0 0
    %323 = vmatprep.subr.bf16.mxu0 0
    %324 = vmatpush1.bf16.msra.mxu0 0
    %325 = vmatprep.subr.bf16.mxu0 0
    %326 = vmatpush1.bf16.msra.mxu0 0
    %327 = vmatprep.mubr.bf16.mxu0 0
    %328 = vmatmul.mubr.bf16.gmra.mrb[0].mxu0 %v290
    %v329 = vpop.f32.mrb[0].mxu0
    %v330 = vadd.f32 0.0, %v329
    %v331 = vpop.f32.mrb[0].mxu0
    %v332 = vpop.f32.mrb[0].mxu0
    %v333 = vpop.f32.mrb[0].mxu0
    %334 = vdwg.mxu0
    %v335 = vrcp.pop %v232
    %v336 = vrcp.pop %v235
    %v337 = vmul.f32 %v282, %v335
    %v338 = vmul.f32 %v330, %v336
    %339 = vst.msk [vmem:[#allocation7] sm:$0xff] %vm121, %v337
    %340 = vst.msk [vmem:[#allocation7 + $0x8] sm:$0xff] %vm121, %v338
    // Predicated region
    $region22: #{tpu_custom_call.1} parent=1 // pred_check
      _
    $region23: #{tpu_custom_call.1} parent=1 // pred_check_branch
      %342 = sbr.rel (0) target = $region25
    $region24: #{tpu_custom_call.1} parent=1 // pred_region
      %s344 = ssub.s32 256, 256
      %345 = vsyncadd [#allocation4], %s344
      %s346 = sshll.u32 [#allocation7], 4
      %s347 = int_to_ptr.vmem [resolvable:$true] %s346
      %352 = dma.vmem_to_hbm [thread:$0]  %s347, 256, %s3, [#allocation4], 128, 128, 8
    $region25: #{tpu_custom_call.1} parent=1 // pred_fallthru
      _
    // Predicated region
    $region26: #{tpu_custom_call.1} parent=1 // pred_check
      _
    $region27: #{tpu_custom_call.1} parent=1 // pred_check_branch
      %354 = sbr.rel (0) target = $region29
    $region28: #{tpu_custom_call.1} parent=1 // pred_region
      %355 = dma.done [#allocation4], 256
    $region29: #{tpu_custom_call.1} parent=1 // pred_fallthru
      _
    %356 = vsyncpa [#allocation3], 1
    %357 = vsyncpa [#allocation6], 1
    %358 = vsyncpa [#allocation4], 1

</llo_original>
